<compile_context>
chip_gen: v6e
topology: v6e:2x2x1
jax: 0.10.0
libtpu: 0.0.40
codegen_flags: <defaults>
</compile_context>

<pallas_src>
import jax
import jax.numpy as jnp
from jax import lax
from jax.experimental import pallas as pl
from jax.experimental.pallas import tpu as pltpu


def _kde_kernel(params_ref, xt_ref, nt_ref, xq_ref, nq_ref, s_ref, out_ref):
    """Accumulate S @ K over train tiles for one query tile.

    params_ref : SMEM (2,)      [a2**2, b**2]
    xt_ref     : VMEM (tn, D)   train points      (tile k of reduction axis)
    nt_ref     : VMEM (tn, 1)   precomputed ||x_train||^2
    xq_ref     : VMEM (tm, D)   query points      (tile j of parallel axis)
    nq_ref     : VMEM (1, tm)   precomputed ||x_query||^2
    s_ref      : VMEM (8, tn)   row 0 = train scores, row 1 = valid-row ones
    out_ref    : VMEM (8, tm)   row 0 = w_kde, row 1 = kde (accumulated over k)
    """
    k_step = pl.program_id(1)

    @pl.when(k_step == 0)
    def _():
        out_ref[...] = jnp.zeros_like(out_ref)

    ra2 = params_ref[0]          # a2 ** 2
    rb = params_ref[1]           # b ** 2   (dists**(2*rb) == d2**rb)

    xt = xt_ref[...]             # (tn, D) f32
    xq = xq_ref[...]             # (tm, D) f32

    # Squared Euclidean distances via the matmul identity (MXU path).  Kept in
    # f32: bf16 inputs would lose accuracy through cancellation for close
    # points, and at small D this matmul is not the bottleneck anyway.
    g = lax.dot_general(xt, xq, (((1,), (1,)), ((), ())),
                        preferred_element_type=jnp.float32)          # (tn, tm)
    d2 = jnp.maximum(nt_ref[...] + nq_ref[...] - 2.0 * g, 0.0)       # (tn, tm)

    # dists ** (2*b^2) == d2 ** (b^2); guard the d2 == 0 diagonal (0**p = 0).
    powd = jnp.where(d2 > 0.0,
                     jnp.exp(rb * jnp.log(jnp.maximum(d2, 1e-30))),
                     0.0)
    kmat = pl.reciprocal(1.0 + ra2 * powd, approx=True)              # (tn, tm)

    # One MXU pass yields both reductions: row 0 = scores @ K, row 1 = sum(K).
    out_ref[...] += jnp.dot(s_ref[...], kmat,
                            preferred_element_type=jnp.float32)


def _round_up(v, k):
    return ((v + k - 1) // k) * k


def _kde_fused(params, x_train, x_query, s_train, *, tn_target=256, tm_target=512):
    """Returns (w_kde, kde), each shape (m,), of the adaptive-kernel KDE of the
    train points evaluated at every query point (single fused pallas_call)."""
    n, d = x_train.shape
    m = x_query.shape[0]

    # Tile sizes: multiples of 128 (lane axis of scores / output blocks),
    # capped so small problems stay a 1x1 grid.  (256, 512) keeps the K tile
    # at 512 KiB f32, comfortably inside the default scoped VMEM on all chips.
    tn = min(tn_target, _round_up(n, 128))
    tm = min(tm_target, _round_up(m, 128))
    n_pad = _round_up(n, tn)
    m_pad = _round_up(m, tm)

    xt = jnp.zeros((n_pad, d), jnp.float32).at[:n].set(x_train)
    xq = jnp.zeros((m_pad, d), jnp.float32).at[:m].set(x_query)

    # Precompute norms (trivial XLA reduces) so the kernel's hot loop does no
    # cross-layout (m,1)->(1,m) relayout and no repeated lane reductions.
    nt = jnp.sum(xt * xt, axis=1, keepdims=True)          # (n_pad, 1)
    nq = jnp.sum(xq * xq, axis=1)[None, :]                # (1, m_pad)

    # Stacked MXU LHS: row 0 = scores, row 1 = ones on valid train rows.
    # Zero rows/columns make the train-axis padding exact.
    s_stack = jnp.zeros((8, n_pad), jnp.float32)
    s_stack = s_stack.at[0, :n].set(s_train)
    s_stack = s_stack.at[1, :n].set(1.0)

    grid = (m_pad // tm, n_pad // tn)   # (query tiles, train-reduction tiles)

    out = pl.pallas_call(
        _kde_kernel,
        out_shape=jax.ShapeDtypeStruct((8, m_pad), jnp.float32),
        grid_spec=pltpu.PrefetchScalarGridSpec(
            num_scalar_prefetch=0,
            grid=grid,
            in_specs=[
                pl.BlockSpec(memory_space=pltpu.MemorySpace.SMEM),   # params
                pl.BlockSpec((tn, d), lambda j, k: (k, 0)),          # X_train
                pl.BlockSpec((tn, 1), lambda j, k: (k, 0)),          # ||xt||^2
                pl.BlockSpec((tm, d), lambda j, k: (j, 0)),          # X_query
                pl.BlockSpec((1, tm), lambda j, k: (0, j)),          # ||xq||^2
                pl.BlockSpec((8, tn), lambda j, k: (0, k)),          # scores/ones
            ],
            out_specs=pl.BlockSpec((8, tm), lambda j, k: (0, j)),
        ),
        compiler_params=pltpu.CompilerParams(
            dimension_semantics=("parallel", "arbitrary")),
    )(params, xt, nt, xq, nq, s_stack)

    return out[0, :m], out[1, :m]


def map_loss(a1, a2, b, embeddings, scores, p_joint, split_key):
    """JAX/Pallas port of MapLoss.forward.  p_joint is unused (as in PyTorch)."""
    del p_joint
    N = embeddings.shape[0]
    n = int(0.9 * N)

    # TODO(synk): PyTorch uses host-side random.sample for the 90/10 split;
    # replaced here by a deterministic keyed jax.random.permutation.
    perm = jax.random.permutation(split_key, N)
    x_perm = embeddings[perm].astype(jnp.float32)   # single HBM gather
    s_perm = scores[perm].astype(jnp.float32)

    x_train = x_perm[:n]          # (n, D)
    s_train = s_perm[:n]          # (n,)
    s_val = s_perm[n:]            # (N-n,)

    a1 = jnp.asarray(a1, jnp.float32)
    a2 = jnp.asarray(a2, jnp.float32)
    b = jnp.asarray(b, jnp.float32)
    ra1 = a1 * a1
    ra2 = a2 * a2
    rb = b * b
    params = jnp.stack([ra2, rb])                   # -> SMEM scalars

    # One fused kernel: queries = [train | val] columns of the permuted matrix.
    w_kde, kde = _kde_fused(params, x_train, x_perm, s_train)   # each (N,)
    kde_reg = w_kde / kde

    train_loss = jnp.sum((s_train - ra1 * kde_reg[:n]) ** 2) / n
    val_loss = jnp.sum((s_val - ra1 * kde_reg[n:]) ** 2) / (N - n)
    return 0.3 * train_loss + val_loss


def _map_loss_ref(a1, a2, b, embeddings, scores, split_key):
    """Pure-JAX reference mirroring the Pallas math (exact reciprocal)."""
    N = embeddings.shape[0]
    n = int(0.9 * N)
    perm = jax.random.permutation(split_key, N)
    x = embeddings[perm].astype(jnp.float32)
    s = scores[perm].astype(jnp.float32)
    xt, st, sv = x[:n], s[:n], s[n:]
    ra1, ra2, rb = a1 ** 2, a2 ** 2, b ** 2
    g = xt @ x.T
    nt = jnp.sum(xt * xt, axis=1, keepdims=True)
    nq = jnp.sum(x * x, axis=1)[None, :]
    d2 = jnp.maximum(nt + nq - 2.0 * g, 0.0)
    powd = jnp.where(d2 > 0.0, d2 ** rb, 0.0)
    k = 1.0 / (1.0 + ra2 * powd)
    w_kde = st @ k
    kde = jnp.sum(k, axis=0)
    reg = w_kde / kde
    tl = jnp.sum((st - ra1 * reg[:n]) ** 2) / n
    vl = jnp.sum((sv - ra1 * reg[n:]) ** 2) / (N - n)
    return 0.3 * tl + vl


if __name__ == "__main__":
    key = jax.random.PRNGKey(0)
    k_emb, k_scores, k_pj, k_split = jax.random.split(key, 4)

    N, D = 80, 16                        # n = 72 train / 8 val
    embeddings = jax.random.normal(k_emb, (N, D), dtype=jnp.float32)
    scores = jax.random.uniform(k_scores, (N,), dtype=jnp.float32)
    p_joint = jax.random.uniform(k_pj, (N, N), dtype=jnp.float32)   # unused

    # Module __init__: a1 = a2 = b = 1.0 (deterministic init).
    a1 = jnp.float32(1.0)
    a2 = jnp.float32(1.0)
    b = jnp.float32(1.0)

    loss = jax.jit(map_loss)(a1, a2, b, embeddings, scores, p_joint, k_split)
    jax.block_until_ready(loss)

    ref = _map_loss_ref(a1, a2, b, embeddings, scores, k_split)

    assert loss.shape == () and bool(jnp.isfinite(loss))
    # approx reciprocal perturbs K at ~1e-4 relative; loose tolerance.
    assert bool(jnp.allclose(loss, ref, rtol=5e-2, atol=5e-3)), (loss, ref)
    print("KERNEL_OK")
</pallas_src>

<mosaic_0001>
module attributes {stable_mosaic.version = 11 : i64} {
  func.func @_kde_kernel(%arg0: i32, %arg1: i32, %arg2: memref<2xf32, #tpu.memory_space<smem>>, %arg3: memref<128x16xf32, #tpu.memory_space<vmem>>, %arg4: memref<128x1xf32, #tpu.memory_space<vmem>>, %arg5: memref<128x16xf32, #tpu.memory_space<vmem>>, %arg6: memref<1x128xf32, #tpu.memory_space<vmem>>, %arg7: memref<8x128xf32, #tpu.memory_space<vmem>>, %arg8: memref<8x128xf32, #tpu.memory_space<vmem>>) attributes {dimension_semantics = [#tpu.dimension_semantics<parallel>, #tpu.dimension_semantics<arbitrary>], iteration_bounds = array<i64: 1, 1>, scalar_prefetch = 0 : i64, scratch_operands = 0 : i64, tpu.core_type = #tpu.core_type<tc>, window_params = [{transform_indices = @transform_0, window_bounds = array<i64: 2>}, {transform_indices = @transform_1, window_bounds = array<i64: 128, 16>}, {transform_indices = @transform_2, window_bounds = array<i64: 128, 1>}, {transform_indices = @transform_3, window_bounds = array<i64: 128, 16>}, {transform_indices = @transform_4, window_bounds = array<i64: 1, 128>}, {transform_indices = @transform_5, window_bounds = array<i64: 8, 128>}, {transform_indices = @transform_6, window_bounds = array<i64: 8, 128>}]} {
    %c0_i32 = arith.constant 0 : i32
    %0 = arith.cmpi eq, %arg1, %c0_i32 : i32
    %1 = arith.extui %0 : i1 to i32
    %c0_i32_0 = arith.constant 0 : i32
    %2 = arith.cmpi ne, %1, %c0_i32_0 : i32
    scf.if %2 {
      %cst_22 = arith.constant 0.000000e+00 : f32
      %38 = vector.broadcast %cst_22 : f32 to vector<8x128xf32>
      %c0_23 = arith.constant 0 : index
      %c0_24 = arith.constant 0 : index
      %39 = vector.load %arg8[%c0_23, %c0_24] : memref<8x128xf32, #tpu.memory_space<vmem>>, vector<8x128xf32>
      tpu.vector_store %arg8[%c0_23, %c0_24], %38 {strides = array<i32>} : memref<8x128xf32, #tpu.memory_space<vmem>>, vector<8x128xf32>,
    } else {
    }
    %c0 = arith.constant 0 : index
    %3 = memref.load %arg2[%c0] : memref<2xf32, #tpu.memory_space<smem>>
    %c1 = arith.constant 1 : index
    %4 = memref.load %arg2[%c1] : memref<2xf32, #tpu.memory_space<smem>>
    %c0_1 = arith.constant 0 : index
    %c0_2 = arith.constant 0 : index
    %5 = vector.load %arg3[%c0_1, %c0_2] : memref<128x16xf32, #tpu.memory_space<vmem>>, vector<128x16xf32>
    %c0_3 = arith.constant 0 : index
    %c0_4 = arith.constant 0 : index
    %6 = vector.load %arg5[%c0_3, %c0_4] : memref<128x16xf32, #tpu.memory_space<vmem>>, vector<128x16xf32>
    %cst = arith.constant dense<0.000000e+00> : vector<128x128xf32>
    %7 = tpu.matmul %5, %6, %cst {dimension_numbers = #tpu.dot_dimension_numbers<[1], [1], [0], [0], [0, 0, 1, 0], [], []>} : vector<128x16xf32>, vector<128x16xf32>, vector<128x128xf32> -> vector<128x128xf32>
    %c0_5 = arith.constant 0 : index
    %c0_6 = arith.constant 0 : index
    %8 = vector.load %arg4[%c0_5, %c0_6] : memref<128x1xf32, #tpu.memory_space<vmem>>, vector<128x1xf32>
    %c0_7 = arith.constant 0 : index
    %c0_8 = arith.constant 0 : index
    %9 = vector.load %arg6[%c0_7, %c0_8] : memref<1x128xf32, #tpu.memory_space<vmem>>, vector<1x128xf32>
    %10 = vector.broadcast %8 : vector<128x1xf32> to vector<128x128xf32>
    %11 = vector.broadcast %9 : vector<1x128xf32> to vector<128x128xf32>
    %12 = arith.addf %10, %11 : vector<128x128xf32>
    %cst_9 = arith.constant 2.000000e+00 : f32
    %13 = vector.broadcast %cst_9 : f32 to vector<128x128xf32>
    %14 = arith.mulf %13, %7 : vector<128x128xf32>
    %15 = arith.subf %12, %14 : vector<128x128xf32>
    %cst_10 = arith.constant 0.000000e+00 : f32
    %16 = vector.broadcast %cst_10 : f32 to vector<128x128xf32>
    %17 = arith.maximumf %15, %16 : vector<128x128xf32>
    %cst_11 = arith.constant 0.000000e+00 : f32
    %18 = vector.broadcast %cst_11 : f32 to vector<128x128xf32>
    %19 = arith.cmpf ogt, %17, %18 : vector<128x128xf32>
    %cst_12 = arith.constant 1.000000e-30 : f32
    %20 = vector.broadcast %cst_12 : f32 to vector<128x128xf32>
    %21 = arith.maximumf %17, %20 : vector<128x128xf32>
    %22 = math.log %21 : vector<128x128xf32>
    %23 = vector.broadcast %4 : f32 to vector<128x128xf32>
    %24 = arith.mulf %23, %22 : vector<128x128xf32>
    %25 = math.exp %24 : vector<128x128xf32>
    %cst_13 = arith.constant 0.000000e+00 : f32
    %26 = vector.broadcast %cst_13 : f32 to vector<128x128xf32>
    %27 = arith.select %19, %25, %26 : vector<128x128xi1>, vector<128x128xf32>
    %28 = vector.broadcast %3 : f32 to vector<128x128xf32>
    %29 = arith.mulf %28, %27 : vector<128x128xf32>
    %cst_14 = arith.constant 1.000000e+00 : f32
    %30 = vector.broadcast %cst_14 : f32 to vector<128x128xf32>
    %31 = arith.addf %30, %29 : vector<128x128xf32>
    %32 = tpu.reciprocal %31 {approx = true} : vector<128x128xf32> -> vector<128x128xf32>
    %c0_15 = arith.constant 0 : index
    %c0_16 = arith.constant 0 : index
    %33 = vector.load %arg8[%c0_15, %c0_16] : memref<8x128xf32, #tpu.memory_space<vmem>>, vector<8x128xf32>
    %c0_17 = arith.constant 0 : index
    %c0_18 = arith.constant 0 : index
    %34 = vector.load %arg7[%c0_17, %c0_18] : memref<8x128xf32, #tpu.memory_space<vmem>>, vector<8x128xf32>
    %cst_19 = arith.constant dense<0.000000e+00> : vector<8x128xf32>
    %35 = tpu.matmul %34, %32, %cst_19 {dimension_numbers = #tpu.dot_dimension_numbers<[1], [0], [0], [1], [0, 0, 1, 1], [], []>} : vector<8x128xf32>, vector<128x128xf32>, vector<8x128xf32> -> vector<8x128xf32>
    %36 = arith.addf %33, %35 : vector<8x128xf32>
    %c0_20 = arith.constant 0 : index
    %c0_21 = arith.constant 0 : index
    %37 = vector.load %arg8[%c0_20, %c0_21] : memref<8x128xf32, #tpu.memory_space<vmem>>, vector<8x128xf32>
    tpu.vector_store %arg8[%c0_20, %c0_21], %36 {strides = array<i32>} : memref<8x128xf32, #tpu.memory_space<vmem>>, vector<8x128xf32>,
    return
  }
  func.func @transform_0(%arg0: i32, %arg1: i32) -> i32 {
    %c0_i32 = arith.constant 0 : i32
    %c0_i32_0 = arith.constant 0 : i32
    return %c0_i32 : i32
  }
  func.func @transform_1(%arg0: i32, %arg1: i32) -> (i32, i32) {
    %c0_i32 = arith.constant 0 : i32
    %c0_i32_0 = arith.constant 0 : i32
    return %arg1, %c0_i32 : i32, i32
  }
  func.func @transform_2(%arg0: i32, %arg1: i32) -> (i32, i32) {
    %c0_i32 = arith.constant 0 : i32
    %c0_i32_0 = arith.constant 0 : i32
    return %arg1, %c0_i32 : i32, i32
  }
  func.func @transform_3(%arg0: i32, %arg1: i32) -> (i32, i32) {
    %c0_i32 = arith.constant 0 : i32
    %c0_i32_0 = arith.constant 0 : i32
    return %arg0, %c0_i32 : i32, i32
  }
  func.func @transform_4(%arg0: i32, %arg1: i32) -> (i32, i32) {
    %c0_i32 = arith.constant 0 : i32
    %c0_i32_0 = arith.constant 0 : i32
    return %c0_i32, %arg0 : i32, i32
  }
  func.func @transform_5(%arg0: i32, %arg1: i32) -> (i32, i32) {
    %c0_i32 = arith.constant 0 : i32
    %c0_i32_0 = arith.constant 0 : i32
    return %c0_i32, %arg1 : i32, i32
  }
  func.func @transform_6(%arg0: i32, %arg1: i32) -> (i32, i32) {
    %c0_i32 = arith.constant 0 : i32
    %c0_i32_0 = arith.constant 0 : i32
    return %c0_i32, %arg0 : i32, i32
  }
}

</mosaic_0001>

<llo_original>
// kernel: map_loss.1
$region0: #{map_loss.1}
  #allocation0 [shape = 'u32[]', space=smem, size = 0x4, offset = 0x4, fixed_abs, tag = 'smem constant byte address 0x4 - core index']
  #allocation1 [shape = 'u32[144,128]{1,0:T(1,128)}', space=vmem, size = 0x12000, scoped, tag = 'internal scratch']
  %s0 = inlined_call_operand.vmem [shape: f32[2], index: 0, kind: input, shape index: {}]
  %s1 = inlined_call_operand.vmem [shape: f32[128,16], index: 1, kind: input, shape index: {}]
  %s2 = inlined_call_operand.vmem [shape: f32[128,1], index: 2, kind: input, shape index: {}]
  %s3 = inlined_call_operand.vmem [shape: f32[128,16], index: 3, kind: input, shape index: {}]
  %s4 = inlined_call_operand.vmem [shape: f32[1,128], index: 4, kind: input, shape index: {}]
  %s5 = inlined_call_operand.vmem [shape: f32[8,128], index: 5, kind: input, shape index: {}]
  %s6 = inlined_call_operand.vmem [shape: f32[8,128], index: 6, kind: output, shape index: {}]
  %s7 = sld [smem:[#allocation0]]
  $region42: #{map_loss.1} parent=0
    _
  %s9 = ssub.s32 1, %s7
  %s10 = scalar_select 0, %s9, %s7
  $region1: #{map_loss.1} parent=0
    #allocation2 [shape = 'u8[512]{0}', space=smem, size = 0x200, scoped, tag = 'input window, operand 0, single buffered']
    #allocation3 [shape = 's32[1]{0}', space=sflag, size = 0x4, scoped, tag = 'scoped memory for map_loss.1']
    %11 = vsyncpa [#allocation3], 0
    // Predicated region
    $region2: #{map_loss.1} parent=1 // pred_check
      _
    $region3: #{map_loss.1} parent=1 // pred_check_branch
      %13 = sbr.rel (0) target = $region5
    $region4: #{map_loss.1} parent=1 // pred_region
      %s15 = ssub.s32 16, 16
      %16 = vsyncadd [#allocation3], %s15
      %s18 = sshll.u32 %s0, 4
      %s19 = int_to_ptr.vmem [resolvable:$true] %s18
      %21 = dma.vmem_to_smem %s19, 16, [#allocation2], [#allocation3]
    $region5: #{map_loss.1} parent=1 // pred_fallthru
      _
    // Predicated region
    $region6: #{map_loss.1} parent=1 // pred_check
      _
    $region7: #{map_loss.1} parent=1 // pred_check_branch
      %23 = sbr.rel (0) target = $region9
    $region8: #{map_loss.1} parent=1 // pred_region
      _
    $region9: #{map_loss.1} parent=1 // pred_fallthru
      _
    // Predicated region
    $region10: #{map_loss.1} parent=1 // pred_check
      _
    $region11: #{map_loss.1} parent=1 // pred_check_branch
      %25 = sbr.rel (0) target = $region13
    $region12: #{map_loss.1} parent=1 // pred_region
      _
    $region13: #{map_loss.1} parent=1 // pred_fallthru
      _
    // Predicated region
    $region14: #{map_loss.1} parent=1 // pred_check
      _
    $region15: #{map_loss.1} parent=1 // pred_check_branch
      %27 = sbr.rel (0) target = $region17
    $region16: #{map_loss.1} parent=1 // pred_region
      _
    $region17: #{map_loss.1} parent=1 // pred_fallthru
      _
    // Predicated region
    $region18: #{map_loss.1} parent=1 // pred_check
      _
    $region19: #{map_loss.1} parent=1 // pred_check_branch
      %29 = sbr.rel (0) target = $region21
    $region20: #{map_loss.1} parent=1 // pred_region
      _
    $region21: #{map_loss.1} parent=1 // pred_fallthru
      _
    // Predicated region
    $region22: #{map_loss.1} parent=1 // pred_check
      _
    $region23: #{map_loss.1} parent=1 // pred_check_branch
      %31 = sbr.rel (0) target = $region25
    $region24: #{map_loss.1} parent=1 // pred_region
      _
    $region25: #{map_loss.1} parent=1 // pred_fallthru
      _
    // Predicated region
    $region26: #{map_loss.1} parent=1 // pred_check
      _
    $region27: #{map_loss.1} parent=1 // pred_check_branch
      %33 = sbr.rel (0) target = $region29
    $region28: #{map_loss.1} parent=1 // pred_region
      %34 = dma.done [#allocation3], 16
    $region29: #{map_loss.1} parent=1 // pred_fallthru
      _
    %35 = sfence
    %p36 = scmp.eq.s32.totalorder 0, 0
    // Predicated region
    $region30: #{map_loss.1} parent=1 // pred_check
      %p37 = pneg %p36
    $region31: #{map_loss.1} parent=1 // pred_check_branch
      %39 = sbr.rel (%p37) target = $region33
    $region32: #{map_loss.1} parent=1 // pred_region
      %40 = vst [vmem:[%s6] sm:$0xff] 0.0
    $region33: #{map_loss.1} parent=1 // pred_fallthru
      _
    %s41 = sld [smem:[#allocation2]]
    %s42 = sld [smem:[#allocation2 + $0x1]]
    %v43 = vld [vmem:[%s1] sm:$0xff]
    %v44 = vld [vmem:[%s1 + $0x8] sm:$0xff]
    %v45 = vld [vmem:[%s1 + $0x10] sm:$0xff]
    %v46 = vld [vmem:[%s1 + $0x18] sm:$0xff]
    %v47 = vld [vmem:[%s1 + $0x20] sm:$0xff]
    %v48 = vld [vmem:[%s1 + $0x28] sm:$0xff]
    %v49 = vld [vmem:[%s1 + $0x30] sm:$0xff]
    %v50 = vld [vmem:[%s1 + $0x38] sm:$0xff]
    %v51 = vld [vmem:[%s1 + $0x40] sm:$0xff]
    %v52 = vld [vmem:[%s1 + $0x48] sm:$0xff]
    %v53 = vld [vmem:[%s1 + $0x50] sm:$0xff]
    %v54 = vld [vmem:[%s1 + $0x58] sm:$0xff]
    %v55 = vld [vmem:[%s1 + $0x60] sm:$0xff]
    %v56 = vld [vmem:[%s1 + $0x68] sm:$0xff]
    %v57 = vld [vmem:[%s1 + $0x70] sm:$0xff]
    %v58 = vld [vmem:[%s1 + $0x78] sm:$0xff]
    %v59 = vld [vmem:[%s3] sm:$0xff]
    %v60 = vld [vmem:[%s3 + $0x8] sm:$0xff]
    %v61 = vld [vmem:[%s3 + $0x10] sm:$0xff]
    %v62 = vld [vmem:[%s3 + $0x18] sm:$0xff]
    %v63 = vld [vmem:[%s3 + $0x20] sm:$0xff]
    %v64 = vld [vmem:[%s3 + $0x28] sm:$0xff]
    %v65 = vld [vmem:[%s3 + $0x30] sm:$0xff]
    %v66 = vld [vmem:[%s3 + $0x38] sm:$0xff]
    %v67 = vld [vmem:[%s3 + $0x40] sm:$0xff]
    %v68 = vld [vmem:[%s3 + $0x48] sm:$0xff]
    %v69 = vld [vmem:[%s3 + $0x50] sm:$0xff]
    %v70 = vld [vmem:[%s3 + $0x58] sm:$0xff]
    %v71 = vld [vmem:[%s3 + $0x60] sm:$0xff]
    %v72 = vld [vmem:[%s3 + $0x68] sm:$0xff]
    %v73 = vld [vmem:[%s3 + $0x70] sm:$0xff]
    %v74 = vld [vmem:[%s3 + $0x78] sm:$0xff]
    %vm75 = vcmask 130048
    %v77 = vsel %vm75, %v43, 0
    %v80 = vsel %vm75, %v44, 0
    %v83 = vsel %vm75, %v45, 0
    %v86 = vsel %vm75, %v46, 0
    %v89 = vsel %vm75, %v47, 0
    %v92 = vsel %vm75, %v48, 0
    %v95 = vsel %vm75, %v49, 0
    %v98 = vsel %vm75, %v50, 0
    %v101 = vsel %vm75, %v51, 0
    %v104 = vsel %vm75, %v52, 0
    %v107 = vsel %vm75, %v53, 0
    %v110 = vsel %vm75, %v54, 0
    %v113 = vsel %vm75, %v55, 0
    %v116 = vsel %vm75, %v56, 0
    %v119 = vsel %vm75, %v57, 0
    %v122 = vsel %vm75, %v58, 0
    %v125 = vsel %vm75, %v59, 0
    %v128 = vsel %vm75, %v60, 0
    %v131 = vsel %vm75, %v61, 0
    %v134 = vsel %vm75, %v62, 0
    %v137 = vsel %vm75, %v63, 0
    %v140 = vsel %vm75, %v64, 0
    %v143 = vsel %vm75, %v65, 0
    %v146 = vsel %vm75, %v66, 0
    %v149 = vsel %vm75, %v67, 0
    %v152 = vsel %vm75, %v68, 0
    %v155 = vsel %vm75, %v69, 0
    %v158 = vsel %vm75, %v70, 0
    %v161 = vsel %vm75, %v71, 0
    %v164 = vsel %vm75, %v72, 0
    %v167 = vsel %vm75, %v73, 0
    %v170 = vsel %vm75, %v74, 0
    %172 = vmatprep.subr.mxu0 0.0
    %173 = vmatpush1.xpose.msra.mxu0 %v170
    %174 = vmatprep.subr.mxu0 0.0
    %175 = vmatpush1.xpose.msra.mxu0 %v167
    %176 = vmatprep.subr.mxu0 0.0
    %177 = vmatpush1.xpose.msra.mxu0 %v164
    %178 = vmatprep.subr.mxu0 0.0
    %179 = vmatpush1.xpose.msra.mxu0 %v161
    %180 = vmatprep.subr.mxu0 0.0
    %181 = vmatpush1.xpose.msra.mxu0 %v158
    %182 = vmatprep.subr.mxu0 0.0
    %183 = vmatpush1.xpose.msra.mxu0 %v155
    %184 = vmatprep.subr.mxu0 0.0
    %185 = vmatpush1.xpose.msra.mxu0 %v152
    %186 = vmatprep.subr.mxu0 0.0
    %187 = vmatpush1.xpose.msra.mxu0 %v149
    %188 = vmatprep.subr.mxu0 0.0
    %189 = vmatpush1.xpose.msra.mxu0 %v146
    %190 = vmatprep.subr.mxu0 0.0
    %191 = vmatpush1.xpose.msra.mxu0 %v143
    %192 = vmatprep.subr.mxu0 0.0
    %193 = vmatpush1.xpose.msra.mxu0 %v140
    %194 = vmatprep.subr.mxu0 0.0
    %195 = vmatpush1.xpose.msra.mxu0 %v137
    %196 = vmatprep.subr.mxu0 0.0
    %197 = vmatpush1.xpose.msra.mxu0 %v134
    %198 = vmatprep.subr.mxu0 0.0
    %199 = vmatpush1.xpose.msra.mxu0 %v131
    %200 = vmatprep.subr.mxu0 0.0
    %201 = vmatpush1.xpose.msra.mxu0 %v128
    %202 = vmatprep.subr.mxu0 0.0
    %203 = vmatpush1.xpose.msra.mxu0 %v125
    %204 = vmatprep.subr.mxu0 0.0
    %205 = vmatpush2.xpose.msra.mxu0 0.0
    %206 = vmatprep.subr.mxu0 0.0
    %207 = vmatpush2.xpose.msra.mxu0 0.0
    %208 = vmatprep.subr.mxu0 0.0
    %209 = vmatpush2.xpose.msra.mxu0 0.0
    %210 = vmatprep.subr.mxu0 0.0
    %211 = vmatpush2.xpose.msra.mxu0 0.0
    %212 = vmatprep.subr.mxu0 0.0
    %213 = vmatpush2.xpose.msra.mxu0 0.0
    %214 = vmatprep.subr.mxu0 0.0
    %215 = vmatpush2.xpose.msra.mxu0 0.0
    %216 = vmatprep.subr.mxu0 0.0
    %217 = vmatpush2.xpose.msra.mxu0 0.0
    %218 = vmatprep.subr.mxu0 0.0
    %219 = vmatpush2.xpose.msra.mxu0 0.0
    %220 = vmatprep.subr.mxu0 0.0
    %221 = vmatpush2.xpose.msra.mxu0 0.0
    %222 = vmatprep.subr.mxu0 0.0
    %223 = vmatpush2.xpose.msra.mxu0 0.0
    %224 = vmatprep.subr.mxu0 0.0
    %225 = vmatpush2.xpose.msra.mxu0 0.0
    %226 = vmatprep.subr.mxu0 0.0
    %227 = vmatpush2.xpose.msra.mxu0 0.0
    %228 = vmatprep.subr.mxu0 0.0
    %229 = vmatpush2.xpose.msra.mxu0 0.0
    %230 = vmatprep.subr.mxu0 0.0
    %231 = vmatpush2.xpose.msra.mxu0 0.0
    %232 = vmatprep.subr.mxu0 0.0
    %233 = vmatpush2.xpose.msra.mxu0 0.0
    %234 = vmatprep.subr.mxu0 0.0
    %235 = vmatpush2.xpose.msra.mxu0 0.0
    %236 = vmatprep.mubr.f32.mxu0 0.0
    %237 = vmatmul.mubr.f32.gmra.mxu0 %v77
    %v238 = vpop.f32.mrf.mxu0
    %v239 = vadd.f32 0.0, %v238
    %v240 = vpop.f32.mrf.mxu0
    %241 = vmatprep.mubr.f32.mxu0 0.0
    %242 = vmatmul.mubr.f32.gmra.mxu0 %v80
    %v243 = vpop.f32.mrf.mxu0
    %v244 = vadd.f32 0.0, %v243
    %v245 = vpop.f32.mrf.mxu0
    %246 = vmatprep.mubr.f32.mxu0 0.0
    %247 = vmatmul.mubr.f32.gmra.mxu0 %v83
    %v248 = vpop.f32.mrf.mxu0
    %v249 = vadd.f32 0.0, %v248
    %v250 = vpop.f32.mrf.mxu0
    %251 = vmatprep.mubr.f32.mxu0 0.0
    %252 = vmatmul.mubr.f32.gmra.mxu0 %v86
    %v253 = vpop.f32.mrf.mxu0
    %v254 = vadd.f32 0.0, %v253
    %v255 = vpop.f32.mrf.mxu0
    %256 = vmatprep.mubr.f32.mxu0 0.0
    %257 = vmatmul.mubr.f32.gmra.mxu0 %v89
    %v258 = vpop.f32.mrf.mxu0
    %v259 = vadd.f32 0.0, %v258
    %v260 = vpop.f32.mrf.mxu0
    %261 = vmatprep.mubr.f32.mxu0 0.0
    %262 = vmatmul.mubr.f32.gmra.mxu0 %v92
    %v263 = vpop.f32.mrf.mxu0
    %v264 = vadd.f32 0.0, %v263
    %v265 = vpop.f32.mrf.mxu0
    %266 = vmatprep.mubr.f32.mxu0 0.0
    %267 = vmatmul.mubr.f32.gmra.mxu0 %v95
    %v268 = vpop.f32.mrf.mxu0
    %v269 = vadd.f32 0.0, %v268
    %v270 = vpop.f32.mrf.mxu0
    %271 = vmatprep.mubr.f32.mxu0 0.0
    %272 = vmatmul.mubr.f32.gmra.mxu0 %v98
    %v273 = vpop.f32.mrf.mxu0
    %v274 = vadd.f32 0.0, %v273
    %v275 = vpop.f32.mrf.mxu0
    %276 = vmatprep.mubr.f32.mxu0 0.0
    %277 = vmatmul.mubr.f32.gmra.mxu0 %v101
    %v278 = vpop.f32.mrf.mxu0
    %v279 = vadd.f32 0.0, %v278
    %v280 = vpop.f32.mrf.mxu0
    %281 = vmatprep.mubr.f32.mxu0 0.0
    %282 = vmatmul.mubr.f32.gmra.mxu0 %v104
    %v283 = vpop.f32.mrf.mxu0
    %v284 = vadd.f32 0.0, %v283
    %v285 = vpop.f32.mrf.mxu0
    %286 = vmatprep.mubr.f32.mxu0 0.0
    %287 = vmatmul.mubr.f32.gmra.mxu0 %v107
    %v288 = vpop.f32.mrf.mxu0
    %v289 = vadd.f32 0.0, %v288
    %v290 = vpop.f32.mrf.mxu0
    %291 = vmatprep.mubr.f32.mxu0 0.0
    %292 = vmatmul.mubr.f32.gmra.mxu0 %v110
    %v293 = vpop.f32.mrf.mxu0
    %v294 = vadd.f32 0.0, %v293
    %v295 = vpop.f32.mrf.mxu0
    %296 = vmatprep.mubr.f32.mxu0 0.0
    %297 = vmatmul.mubr.f32.gmra.mxu0 %v113
    %v298 = vpop.f32.mrf.mxu0
    %v299 = vadd.f32 0.0, %v298
    %v300 = vpop.f32.mrf.mxu0
    %301 = vmatprep.mubr.f32.mxu0 0.0
    %302 = vmatmul.mubr.f32.gmra.mxu0 %v116
    %v303 = vpop.f32.mrf.mxu0
    %v304 = vadd.f32 0.0, %v303
    %v305 = vpop.f32.mrf.mxu0
    %306 = vmatprep.mubr.f32.mxu0 0.0
    %307 = vmatmul.mubr.f32.gmra.mxu0 %v119
    %v308 = vpop.f32.mrf.mxu0
    %v309 = vadd.f32 0.0, %v308
    %v310 = vpop.f32.mrf.mxu0
    %311 = vmatprep.mubr.f32.mxu0 0.0
    %312 = vmatmul.mubr.f32.gmra.mxu0 %v122
    %v313 = vpop.f32.mrf.mxu0
    %v314 = vadd.f32 0.0, %v313
    %v315 = vpop.f32.mrf.mxu0
    %316 = vdwg.mxu0
    %v317 = vld [vmem:[%s2] sm:$0xff]
    %v318 = vld [vmem:[%s2 + $0x8] sm:$0xff]
    %v319 = vld [vmem:[%s2 + $0x10] sm:$0xff]
    %v320 = vld [vmem:[%s2 + $0x18] sm:$0xff]
    %v321 = vld [vmem:[%s2 + $0x20] sm:$0xff]
    %v322 = vld [vmem:[%s2 + $0x28] sm:$0xff]
    %v323 = vld [vmem:[%s2 + $0x30] sm:$0xff]
    %v324 = vld [vmem:[%s2 + $0x38] sm:$0xff]
    %v325 = vld [vmem:[%s2 + $0x40] sm:$0xff]
    %v326 = vld [vmem:[%s2 + $0x48] sm:$0xff]
    %v327 = vld [vmem:[%s2 + $0x50] sm:$0xff]
    %v328 = vld [vmem:[%s2 + $0x58] sm:$0xff]
    %v329 = vld [vmem:[%s2 + $0x60] sm:$0xff]
    %v330 = vld [vmem:[%s2 + $0x68] sm:$0xff]
    %v331 = vld [vmem:[%s2 + $0x70] sm:$0xff]
    %v332 = vld [vmem:[%s2 + $0x78] sm:$0xff]
    %v333 = vld [vmem:[%s4] sm:$0x1]
    %335 = vset.pattern.permute.xlu0 0
    %336 = vperm.xlu0 %335, %v317
    %v337 = vpop.permute.xlu0 %336
    %340 = vset.pattern.permute.xlu0 0
    %341 = vperm.xlu0 %340, %v318
    %v342 = vpop.permute.xlu0 %341
    %345 = vset.pattern.permute.xlu0 0
    %346 = vperm.xlu0 %345, %v319
    %v347 = vpop.permute.xlu0 %346
    %350 = vset.pattern.permute.xlu0 0
    %351 = vperm.xlu0 %350, %v320
    %v352 = vpop.permute.xlu0 %351
    %355 = vset.pattern.permute.xlu0 0
    %356 = vperm.xlu0 %355, %v321
    %v357 = vpop.permute.xlu0 %356
    %360 = vset.pattern.permute.xlu0 0
    %361 = vperm.xlu0 %360, %v322
    %v362 = vpop.permute.xlu0 %361
    %365 = vset.pattern.permute.xlu0 0
    %366 = vperm.xlu0 %365, %v323
    %v367 = vpop.permute.xlu0 %366
    %370 = vset.pattern.permute.xlu0 0
    %371 = vperm.xlu0 %370, %v324
    %v372 = vpop.permute.xlu0 %371
    %375 = vset.pattern.permute.xlu0 0
    %376 = vperm.xlu0 %375, %v325
    %v377 = vpop.permute.xlu0 %376
    %380 = vset.pattern.permute.xlu0 0
    %381 = vperm.xlu0 %380, %v326
    %v382 = vpop.permute.xlu0 %381
    %385 = vset.pattern.permute.xlu0 0
    %386 = vperm.xlu0 %385, %v327
    %v387 = vpop.permute.xlu0 %386
    %390 = vset.pattern.permute.xlu0 0
    %391 = vperm.xlu0 %390, %v328
    %v392 = vpop.permute.xlu0 %391
    %395 = vset.pattern.permute.xlu0 0
    %396 = vperm.xlu0 %395, %v329
    %v397 = vpop.permute.xlu0 %396
    %400 = vset.pattern.permute.xlu0 0
    %401 = vperm.xlu0 %400, %v330
    %v402 = vpop.permute.xlu0 %401
    %405 = vset.pattern.permute.xlu0 0
    %406 = vperm.xlu0 %405, %v331
    %v407 = vpop.permute.xlu0 %406
    %410 = vset.pattern.permute.xlu0 0
    %411 = vperm.xlu0 %410, %v332
    %v412 = vpop.permute.xlu0 %411
    %v415 = vlaneseq
    %v416 = vshrl.u32 %v415, 7
    %v417 = vsub.s32 0, %v416
    %v418 = vrot.slane %v333, %v417
    %v420 = vadd.f32 %v337, %v418
    %v421 = vadd.f32 %v342, %v418
    %v422 = vadd.f32 %v347, %v418
    %v423 = vadd.f32 %v352, %v418
    %v424 = vadd.f32 %v357, %v418
    %v425 = vadd.f32 %v362, %v418
    %v426 = vadd.f32 %v367, %v418
    %v427 = vadd.f32 %v372, %v418
    %v428 = vadd.f32 %v377, %v418
    %v429 = vadd.f32 %v382, %v418
    %v430 = vadd.f32 %v387, %v418
    %v431 = vadd.f32 %v392, %v418
    %v432 = vadd.f32 %v397, %v418
    %v433 = vadd.f32 %v402, %v418
    %v434 = vadd.f32 %v407, %v418
    %v435 = vadd.f32 %v412, %v418
    %v436 = vmul.f32 %v239, 2.0
    %v437 = vmul.f32 %v244, 2.0
    %v438 = vmul.f32 %v249, 2.0
    %v439 = vmul.f32 %v254, 2.0
    %v440 = vmul.f32 %v259, 2.0
    %v441 = vmul.f32 %v264, 2.0
    %v442 = vmul.f32 %v269, 2.0
    %v443 = vmul.f32 %v274, 2.0
    %v444 = vmul.f32 %v279, 2.0
    %v445 = vmul.f32 %v284, 2.0
    %v446 = vmul.f32 %v289, 2.0
    %v447 = vmul.f32 %v294, 2.0
    %v448 = vmul.f32 %v299, 2.0
    %v449 = vmul.f32 %v304, 2.0
    %v450 = vmul.f32 %v309, 2.0
    %v451 = vmul.f32 %v314, 2.0
    %v452 = vsub.f32 %v420, %v436
    %v453 = vsub.f32 %v421, %v437
    %v454 = vsub.f32 %v422, %v438
    %v455 = vsub.f32 %v423, %v439
    %v456 = vsub.f32 %v424, %v440
    %v457 = vsub.f32 %v425, %v441
    %v458 = vsub.f32 %v426, %v442
    %v459 = vsub.f32 %v427, %v443
    %v460 = vsub.f32 %v428, %v444
    %v461 = vsub.f32 %v429, %v445
    %v462 = vsub.f32 %v430, %v446
    %v463 = vsub.f32 %v431, %v447
    %v464 = vsub.f32 %v432, %v448
    %v465 = vsub.f32 %v433, %v449
    %v466 = vsub.f32 %v434, %v450
    %v467 = vsub.f32 %v435, %v451
    %v468 = vmax.f32 %v452, 0.0
    %v469 = vmax.f32 %v453, 0.0
    %v470 = vmax.f32 %v454, 0.0
    %v471 = vmax.f32 %v455, 0.0
    %v472 = vmax.f32 %v456, 0.0
    %v473 = vmax.f32 %v457, 0.0
    %v474 = vmax.f32 %v458, 0.0
    %v475 = vmax.f32 %v459, 0.0
    %v476 = vmax.f32 %v460, 0.0
    %v477 = vmax.f32 %v461, 0.0
    %v478 = vmax.f32 %v462, 0.0
    %v479 = vmax.f32 %v463, 0.0
    %v480 = vmax.f32 %v464, 0.0
    %v481 = vmax.f32 %v465, 0.0
    %v482 = vmax.f32 %v466, 0.0
    %v483 = vmax.f32 %v467, 0.0
    %vm484 = vcmp.gt.f32.partialorder %v468, 0.0
    %vm485 = vcmp.gt.f32.partialorder %v469, 0.0
    %vm486 = vcmp.gt.f32.partialorder %v470, 0.0
    %vm487 = vcmp.gt.f32.partialorder %v471, 0.0
    %vm488 = vcmp.gt.f32.partialorder %v472, 0.0
    %vm489 = vcmp.gt.f32.partialorder %v473, 0.0
    %vm490 = vcmp.gt.f32.partialorder %v474, 0.0
    %vm491 = vcmp.gt.f32.partialorder %v475, 0.0
    %vm492 = vcmp.gt.f32.partialorder %v476, 0.0
    %vm493 = vcmp.gt.f32.partialorder %v477, 0.0
    %vm494 = vcmp.gt.f32.partialorder %v478, 0.0
    %vm495 = vcmp.gt.f32.partialorder %v479, 0.0
    %vm496 = vcmp.gt.f32.partialorder %v480, 0.0
    %vm497 = vcmp.gt.f32.partialorder %v481, 0.0
    %vm498 = vcmp.gt.f32.partialorder %v482, 0.0
    %vm499 = vcmp.gt.f32.partialorder %v483, 0.0
    %v500 = vmax.f32 %v468, 1e-30
    %v501 = vmax.f32 %v469, 1e-30
    %v502 = vmax.f32 %v470, 1e-30
    %v503 = vmax.f32 %v471, 1e-30
    %v504 = vmax.f32 %v472, 1e-30
    %v505 = vmax.f32 %v473, 1e-30
    %v506 = vmax.f32 %v474, 1e-30
    %v507 = vmax.f32 %v475, 1e-30
    %v508 = vmax.f32 %v476, 1e-30
    %v509 = vmax.f32 %v477, 1e-30
    %v510 = vmax.f32 %v478, 1e-30
    %v511 = vmax.f32 %v479, 1e-30
    %v512 = vmax.f32 %v480, 1e-30
    %v513 = vmax.f32 %v481, 1e-30
    %v514 = vmax.f32 %v482, 1e-30
    %v515 = vmax.f32 %v483, 1e-30
    %v516 = vlog2.pop %v500
    %v517 = vmul.f32 %v516, 0.6931472
    %v518 = vlog2.pop %v501
    %v519 = vmul.f32 %v518, 0.6931472
    %v520 = vlog2.pop %v502
    %v521 = vmul.f32 %v520, 0.6931472
    %v522 = vlog2.pop %v503
    %v523 = vmul.f32 %v522, 0.6931472
    %v524 = vlog2.pop %v504
    %v525 = vmul.f32 %v524, 0.6931472
    %v526 = vlog2.pop %v505
    %v527 = vmul.f32 %v526, 0.6931472
    %v528 = vlog2.pop %v506
    %v529 = vmul.f32 %v528, 0.6931472
    %v530 = vlog2.pop %v507
    %v531 = vmul.f32 %v530, 0.6931472
    %v532 = vlog2.pop %v508
    %v533 = vmul.f32 %v532, 0.6931472
    %v534 = vlog2.pop %v509
    %v535 = vmul.f32 %v534, 0.6931472
    %v536 = vlog2.pop %v510
    %v537 = vmul.f32 %v536, 0.6931472
    %v538 = vlog2.pop %v511
    %v539 = vmul.f32 %v538, 0.6931472
    %v540 = vlog2.pop %v512
    %v541 = vmul.f32 %v540, 0.6931472
    %v542 = vlog2.pop %v513
    %v543 = vmul.f32 %v542, 0.6931472
    %v544 = vlog2.pop %v514
    %v545 = vmul.f32 %v544, 0.6931472
    %v546 = vlog2.pop %v515
    %v547 = vmul.f32 %v546, 0.6931472
    %v548 = vstv %s42
    %v549 = vmul.f32 %v548, %v517
    %v550 = vmul.f32 %v548, %v519
    %v551 = vmul.f32 %v548, %v521
    %v552 = vmul.f32 %v548, %v523
    %v553 = vmul.f32 %v548, %v525
    %v554 = vmul.f32 %v548, %v527
    %v555 = vmul.f32 %v548, %v529
    %v556 = vmul.f32 %v548, %v531
    %v557 = vmul.f32 %v548, %v533
    %v558 = vmul.f32 %v548, %v535
    %v559 = vmul.f32 %v548, %v537
    %v560 = vmul.f32 %v548, %v539
    %v561 = vmul.f32 %v548, %v541
    %v562 = vmul.f32 %v548, %v543
    %v563 = vmul.f32 %v548, %v545
    %v564 = vmul.f32 %v548, %v547
    %v565 = vmul.f32 %v549, 1.442695
    %v566 = vpow.pop %v565
    %v567 = vmul.f32 %v550, 1.442695
    %v568 = vpow.pop %v567
    %v569 = vmul.f32 %v551, 1.442695
    %v570 = vpow.pop %v569
    %v571 = vmul.f32 %v552, 1.442695
    %v572 = vpow.pop %v571
    %v573 = vmul.f32 %v553, 1.442695
    %v574 = vpow.pop %v573
    %v575 = vmul.f32 %v554, 1.442695
    %v576 = vpow.pop %v575
    %v577 = vmul.f32 %v555, 1.442695
    %v578 = vpow.pop %v577
    %v579 = vmul.f32 %v556, 1.442695
    %v580 = vpow.pop %v579
    %v581 = vmul.f32 %v557, 1.442695
    %v582 = vpow.pop %v581
    %v583 = vmul.f32 %v558, 1.442695
    %v584 = vpow.pop %v583
    %v585 = vmul.f32 %v559, 1.442695
    %v586 = vpow.pop %v585
    %v587 = vmul.f32 %v560, 1.442695
    %v588 = vpow.pop %v587
    %v589 = vmul.f32 %v561, 1.442695
    %v590 = vpow.pop %v589
    %v591 = vmul.f32 %v562, 1.442695
    %v592 = vpow.pop %v591
    %v593 = vmul.f32 %v563, 1.442695
    %v594 = vpow.pop %v593
    %v595 = vmul.f32 %v564, 1.442695
    %v596 = vpow.pop %v595
    %v597 = vsel %vm484, %v566, 0.0
    %v598 = vsel %vm485, %v568, 0.0
    %v599 = vsel %vm486, %v570, 0.0
    %v600 = vsel %vm487, %v572, 0.0
    %v601 = vsel %vm488, %v574, 0.0
    %v602 = vsel %vm489, %v576, 0.0
    %v603 = vsel %vm490, %v578, 0.0
    %v604 = vsel %vm491, %v580, 0.0
    %v605 = vsel %vm492, %v582, 0.0
    %v606 = vsel %vm493, %v584, 0.0
    %v607 = vsel %vm494, %v586, 0.0
    %v608 = vsel %vm495, %v588, 0.0
    %v609 = vsel %vm496, %v590, 0.0
    %v610 = vsel %vm497, %v592, 0.0
    %v611 = vsel %vm498, %v594, 0.0
    %v612 = vsel %vm499, %v596, 0.0
    %v613 = vstv %s41
    %v614 = vmul.f32 %v613, %v597
    %v615 = vmul.f32 %v613, %v598
    %v616 = vmul.f32 %v613, %v599
    %v617 = vmul.f32 %v613, %v600
    %v618 = vmul.f32 %v613, %v601
    %v619 = vmul.f32 %v613, %v602
    %v620 = vmul.f32 %v613, %v603
    %v621 = vmul.f32 %v613, %v604
    %v622 = vmul.f32 %v613, %v605
    %v623 = vmul.f32 %v613, %v606
    %v624 = vmul.f32 %v613, %v607
    %v625 = vmul.f32 %v613, %v608
    %v626 = vmul.f32 %v613, %v609
    %v627 = vmul.f32 %v613, %v610
    %v628 = vmul.f32 %v613, %v611
    %v629 = vmul.f32 %v613, %v612
    %v630 = vadd.f32 %v614, 1.0
    %v631 = vadd.f32 %v615, 1.0
    %v632 = vadd.f32 %v616, 1.0
    %v633 = vadd.f32 %v617, 1.0
    %v634 = vadd.f32 %v618, 1.0
    %v635 = vadd.f32 %v619, 1.0
    %v636 = vadd.f32 %v620, 1.0
    %v637 = vadd.f32 %v621, 1.0
    %v638 = vadd.f32 %v622, 1.0
    %v639 = vadd.f32 %v623, 1.0
    %v640 = vadd.f32 %v624, 1.0
    %v641 = vadd.f32 %v625, 1.0
    %v642 = vadd.f32 %v626, 1.0
    %v643 = vadd.f32 %v627, 1.0
    %v644 = vadd.f32 %v628, 1.0
    %v645 = vadd.f32 %v629, 1.0
    %v646 = vrcp.pop %v630
    %v647 = vrcp.pop %v631
    %v648 = vrcp.pop %v632
    %v649 = vrcp.pop %v633
    %v650 = vrcp.pop %v634
    %v651 = vrcp.pop %v635
    %v652 = vrcp.pop %v636
    %v653 = vrcp.pop %v637
    %v654 = vrcp.pop %v638
    %v655 = vrcp.pop %v639
    %v656 = vrcp.pop %v640
    %v657 = vrcp.pop %v641
    %v658 = vrcp.pop %v642
    %v659 = vrcp.pop %v643
    %v660 = vrcp.pop %v644
    %v661 = vrcp.pop %v645
    %v662 = vld [vmem:[%s6] sm:$0xff]
    %v663 = vld [vmem:[%s5] sm:$0xff]
    %664 = vmatprep.subr.mxu0 0.0
    %665 = vmatpush1.msra.mxu0 %v661
    %666 = vmatprep.subr.mxu0 0.0
    %667 = vmatpush1.msra.mxu0 %v660
    %668 = vmatprep.subr.mxu0 0.0
    %669 = vmatpush1.msra.mxu0 %v659
    %670 = vmatprep.subr.mxu0 0.0
    %671 = vmatpush1.msra.mxu0 %v658
    %672 = vmatprep.subr.mxu0 0.0
    %673 = vmatpush1.msra.mxu0 %v657
    %674 = vmatprep.subr.mxu0 0.0
    %675 = vmatpush1.msra.mxu0 %v656
    %676 = vmatprep.subr.mxu0 0.0
    %677 = vmatpush1.msra.mxu0 %v655
    %678 = vmatprep.subr.mxu0 0.0
    %679 = vmatpush1.msra.mxu0 %v654
    %680 = vmatprep.subr.mxu0 0.0
    %681 = vmatpush1.msra.mxu0 %v653
    %682 = vmatprep.subr.mxu0 0.0
    %683 = vmatpush1.msra.mxu0 %v652
    %684 = vmatprep.subr.mxu0 0.0
    %685 = vmatpush1.msra.mxu0 %v651
    %686 = vmatprep.subr.mxu0 0.0
    %687 = vmatpush1.msra.mxu0 %v650
    %688 = vmatprep.subr.mxu0 0.0
    %689 = vmatpush1.msra.mxu0 %v649
    %690 = vmatprep.subr.mxu0 0.0
    %691 = vmatpush1.msra.mxu0 %v648
    %692 = vmatprep.subr.mxu0 0.0
    %693 = vmatpush1.msra.mxu0 %v647
    %694 = vmatprep.subr.mxu0 0.0
    %695 = vmatpush1.msra.mxu0 %v646
    %696 = vmatprep.subr.mxu0 0.0
    %697 = vmatpush2.msra.mxu0 0.0
    %698 = vmatprep.subr.mxu0 0.0
    %699 = vmatpush2.msra.mxu0 0.0
    %700 = vmatprep.subr.mxu0 0.0
    %701 = vmatpush2.msra.mxu0 0.0
    %702 = vmatprep.subr.mxu0 0.0
    %703 = vmatpush2.msra.mxu0 0.0
    %704 = vmatprep.subr.mxu0 0.0
    %705 = vmatpush2.msra.mxu0 0.0
    %706 = vmatprep.subr.mxu0 0.0
    %707 = vmatpush2.msra.mxu0 0.0
    %708 = vmatprep.subr.mxu0 0.0
    %709 = vmatpush2.msra.mxu0 0.0
    %710 = vmatprep.subr.mxu0 0.0
    %711 = vmatpush2.msra.mxu0 0.0
    %712 = vmatprep.subr.mxu0 0.0
    %713 = vmatpush2.msra.mxu0 0.0
    %714 = vmatprep.subr.mxu0 0.0
    %715 = vmatpush2.msra.mxu0 0.0
    %716 = vmatprep.subr.mxu0 0.0
    %717 = vmatpush2.msra.mxu0 0.0
    %718 = vmatprep.subr.mxu0 0.0
    %719 = vmatpush2.msra.mxu0 0.0
    %720 = vmatprep.subr.mxu0 0.0
    %721 = vmatpush2.msra.mxu0 0.0
    %722 = vmatprep.subr.mxu0 0.0
    %723 = vmatpush2.msra.mxu0 0.0
    %724 = vmatprep.subr.mxu0 0.0
    %725 = vmatpush2.msra.mxu0 0.0
    %726 = vmatprep.subr.mxu0 0.0
    %727 = vmatpush2.msra.mxu0 0.0
    %728 = vmatprep.mubr.f32.mxu0 0.0
    %729 = vmatmul.mubr.f32.gmra.mxu0 %v663
    %v730 = vpop.f32.mrf.mxu0
    %v731 = vadd.f32 0.0, %v730
    %v732 = vpop.f32.mrf.mxu0
    %733 = vdwg.mxu0
    %v734 = vadd.f32 %v662, %v731
    %735 = vst [vmem:[%s6] sm:$0xff] %v734
    // Predicated region
    $region34: #{map_loss.1} parent=1 // pred_check
      _
    $region35: #{map_loss.1} parent=1 // pred_check_branch
      %737 = sbr.rel (0) target = $region37
    $region36: #{map_loss.1} parent=1 // pred_region
      _
    $region37: #{map_loss.1} parent=1 // pred_fallthru
      _
    // Predicated region
    $region38: #{map_loss.1} parent=1 // pred_check
      _
    $region39: #{map_loss.1} parent=1 // pred_check_branch
      %739 = sbr.rel (0) target = $region41
    $region40: #{map_loss.1} parent=1 // pred_region
      _
    $region41: #{map_loss.1} parent=1 // pred_fallthru
      _
    %740 = vsyncpa [#allocation3], 1

</llo_original>
